<compile_context>
chip_gen: v7x
topology: tpu7x:2x2x1
jax: 0.10.0
libtpu: 0.0.40
codegen_flags: <defaults>
</compile_context>

<pallas_src>
import functools
import math

import jax
import jax.numpy as jnp
from jax import lax
from jax.experimental import pallas as pl
from jax.experimental.pallas import tpu as pltpu


# ---------------------------------------------------------------------------
# helpers
# ---------------------------------------------------------------------------
def _pick_tile(dim, pref, aligns=(128, 8)):
    """Largest tile <= pref that evenly divides `dim`, trying coarse alignment
    first (128 for MXU/lane friendliness, then 8 for sublane).  If dim fits
    entirely under pref we use the full extent (always legal for the TPU
    (8,128) block constraint); otherwise fall back to the full dim."""
    if dim <= pref:
        return dim
    for align in aligns:
        t = (pref // align) * align
        while t >= align:
            if dim % t == 0:
                return t
            t -= align
    return dim


# ---------------------------------------------------------------------------
# Tiled linear (nn.Linear) kernel:  out = (x @ w + b) * out_scale
# ---------------------------------------------------------------------------
def _linear_kernel(x_ref, w_ref, b_ref, o_ref, acc_ref, *, out_scale):
    k = pl.program_id(2)

    @pl.when(k == 0)
    def _():
        acc_ref[...] = jnp.zeros_like(acc_ref)

    acc_ref[...] += jnp.dot(x_ref[...], w_ref[...],
                            preferred_element_type=jnp.float32)

    @pl.when(k == pl.num_programs(2) - 1)
    def _():
        r = acc_ref[...] + b_ref[...]
        if out_scale != 1.0:            # static python branch; free epilogue mul
            r = r * out_scale
        o_ref[...] = r.astype(o_ref.dtype)


def _linear(x, w, b, *, out_scale=1.0, tm_pref=256, tn_pref=256, tk_pref=512):
    """x:(M,K) @ w:(K,N) + b:(1,N)  (PyTorch nn.Linear semantics)."""
    m, kd = x.shape
    _, n = w.shape
    tm = _pick_tile(m, tm_pref, (128, 8))
    tn = _pick_tile(n, tn_pref, (128,))
    tk = _pick_tile(kd, tk_pref, (128,))
    grid = (m // tm, n // tn, kd // tk)
    kernel = functools.partial(_linear_kernel, out_scale=out_scale)
    return pl.pallas_call(
        kernel,
        out_shape=jax.ShapeDtypeStruct((m, n), x.dtype),
        grid=grid,
        in_specs=[
            pl.BlockSpec((tm, tk), lambda i, j, k: (i, k)),
            pl.BlockSpec((tk, tn), lambda i, j, k: (k, j)),
            pl.BlockSpec((1, tn), lambda i, j, k: (0, j)),
        ],
        out_specs=pl.BlockSpec((tm, tn), lambda i, j, k: (i, j)),
        scratch_shapes=[pltpu.VMEM((tm, tn), jnp.float32)],
        compiler_params=pltpu.CompilerParams(
            dimension_semantics=("parallel", "parallel", "arbitrary")),
    )(x, w, b)


# ---------------------------------------------------------------------------
# Multi-head FullAttention kernel (all heads of one (batch, q-tile) per step)
# ---------------------------------------------------------------------------
def _mha_kernel(q_ref, k_ref, v_ref, o_ref, *a_refs, n_heads,
                return_attention, matmul_dtype):
    # q_ref: (1, tl, H, E)   k_ref: (1, S, H, E)   v_ref: (1, S, H, Dv)
    # o_ref: (1, tl, H*Dv)   a_refs[0] (optional): (1, H, tl, S)
    qb = q_ref[0]  # (tl, H, E) -- Q already carries the 1/sqrt(d_k) scale
    kb = k_ref[0]  # (S, H, E)
    vb = v_ref[0]  # (S, H, Dv)

    out_heads = []
    for h in range(n_heads):
        q_h = qb[:, h, :].astype(matmul_dtype)
        k_h = kb[:, h, :].astype(matmul_dtype)
        v_h = vb[:, h, :].astype(matmul_dtype)

        # QK^T via dot_general contracting last dims (no explicit k.T).
        scores = lax.dot_general(
            q_h, k_h,
            dimension_numbers=(((1,), (1,)), ((), ())),
            preferred_element_type=jnp.float32)               # (tl, S)

        # Softmax in f32.
        m = jnp.max(scores, axis=-1, keepdims=True)
        e = jnp.exp(scores - m)
        denom = jnp.sum(e, axis=-1, keepdims=True)
        if return_attention:
            attn = e / denom                                   # exact weights
            a_refs[0][0, h] = attn.astype(a_refs[0].dtype)     # per-head store
        else:
            attn = e * pl.reciprocal(denom, approx=True)       # EUP vrcp

        out_h = lax.dot_general(
            attn.astype(matmul_dtype), v_h,
            dimension_numbers=(((1,), (0,)), ((), ())),
            preferred_element_type=jnp.float32)                # (tl, Dv)
        out_heads.append(out_h.astype(o_ref.dtype))

    # Lane-dense (tl, H*Dv) slab -> single wide store, free reshape downstream.
    o_ref[0] = jnp.concatenate(out_heads, axis=-1)


def _multihead_attention(q, k, v, *, n_heads, return_attention,
                         matmul_dtype, tl_pref=256):
    """q:(B,L,H*E), k:(B,S,H*E), v:(B,S,H*Dv) ->
       out:(B,L,H*Dv), attn:(B,H,L,S) or None."""
    B, L, HE = q.shape
    _, S, _ = k.shape
    HD = v.shape[-1]
    H = n_heads
    E = HE // H
    Dv = HD // H

    # Free reshapes (no transpose / data movement): split the head dim.
    q4 = q.reshape(B, L, H, E)
    k4 = k.reshape(B, S, H, E)
    v4 = v.reshape(B, S, H, Dv)

    tl = _pick_tile(L, tl_pref, (128, 8))
    grid = (B, L // tl)

    out_shapes = [jax.ShapeDtypeStruct((B, L, H * Dv), q.dtype)]
    out_specs = [pl.BlockSpec((1, tl, H * Dv), lambda b, l: (b, l, 0))]
    if return_attention:
        out_shapes.append(jax.ShapeDtypeStruct((B, H, L, S), jnp.float32))
        out_specs.append(pl.BlockSpec((1, H, tl, S), lambda b, l: (b, 0, l, 0)))

    kernel = functools.partial(
        _mha_kernel, n_heads=H,
        return_attention=return_attention, matmul_dtype=matmul_dtype)

    outs = pl.pallas_call(
        kernel,
        out_shape=tuple(out_shapes),
        grid=grid,
        in_specs=[
            pl.BlockSpec((1, tl, H, E), lambda b, l: (b, l, 0, 0)),
            pl.BlockSpec((1, S, H, E), lambda b, l: (b, 0, 0, 0)),
            pl.BlockSpec((1, S, H, Dv), lambda b, l: (b, 0, 0, 0)),
        ],
        out_specs=tuple(out_specs),
        compiler_params=pltpu.CompilerParams(
            dimension_semantics=("parallel", "parallel")),
    )(q4, k4, v4)

    out = outs[0]
    attn = outs[1] if return_attention else None
    return out, attn


# ---------------------------------------------------------------------------
# AttentionLayer forward
# ---------------------------------------------------------------------------
def attention_layer_forward(params, queries, keys, values, attention_mask=None,
                            *, n_heads, mix=False, output_attention=True,
                            matmul_dtype=jnp.bfloat16):
    B, L, d_model = queries.shape
    _, S, _ = keys.shape
    H = n_heads

    d_keys = params["wq"].shape[1] // H
    d_values = params["wv"].shape[1] // H
    scale = 1.0 / math.sqrt(d_keys)

    # Q / K / V projections (nn.Linear) — tiled Pallas matmul kernels.
    # The softmax scale is folded into the Q projection epilogue.
    q = _linear(queries.reshape(B * L, d_model), params["wq"], params["bq"],
                out_scale=scale)
    k = _linear(keys.reshape(B * S, d_model), params["wk"], params["bk"])
    v = _linear(values.reshape(B * S, d_model), params["wv"], params["bv"])

    # Keep the natural (B, seq, H*d) layout — the attention kernel's BlockSpecs
    # do the per-head split; no transposes / extra HBM passes.
    q = q.reshape(B, L, H * d_keys)
    k = k.reshape(B, S, H * d_keys)
    v = v.reshape(B, S, H * d_values)

    out, attention = _multihead_attention(
        q, k, v, n_heads=H, return_attention=output_attention,
        matmul_dtype=matmul_dtype)            # out: (B, L, H*Dv) lane-dense

    if mix:
        # Reproduce the PyTorch out.transpose(2, 1).contiguous().view(B, L, -1).
        out = jnp.transpose(out.reshape(B, L, H, d_values),
                            (0, 2, 1, 3)).reshape(B, L, H * d_values)

    # Output projection (nn.Linear) — tiled Pallas matmul kernel.
    out = _linear(out.reshape(B * L, H * d_values), params["wo"], params["bo"])
    out = out.reshape(B, L, d_model)
    return out, attention


def init_params(key, d_model, n_heads, d_keys=None, d_values=None):
    d_keys = d_keys or d_model // n_heads
    d_values = d_values or d_model // n_heads
    ks = jax.random.split(key, 8)

    def lin(kw, kb, d_in, d_out):
        bound = 1.0 / math.sqrt(d_in)
        w = jax.random.uniform(kw, (d_in, d_out), jnp.float32, -bound, bound)
        b = jax.random.uniform(kb, (1, d_out), jnp.float32, -bound, bound)
        return w, b

    wq, bq = lin(ks[0], ks[1], d_model, d_keys * n_heads)
    wk, bk = lin(ks[2], ks[3], d_model, d_keys * n_heads)
    wv, bv = lin(ks[4], ks[5], d_model, d_values * n_heads)
    wo, bo = lin(ks[6], ks[7], d_values * n_heads, d_model)
    return dict(wq=wq, bq=bq, wk=wk, bk=bk, wv=wv, bv=bv, wo=wo, bo=bo)


if __name__ == "__main__":
    B, L, S = 2, 8, 8
    d_model, n_heads = 32, 4

    key = jax.random.PRNGKey(0)
    kp, kq, kk, kv = jax.random.split(key, 4)
    params = init_params(kp, d_model, n_heads)

    queries = jax.random.normal(kq, (B, L, d_model), jnp.float32)
    keys = jax.random.normal(kk, (B, S, d_model), jnp.float32)
    values = jax.random.normal(kv, (B, S, d_model), jnp.float32)

    out, attn = attention_layer_forward(
        params, queries, keys, values, attention_mask=None,
        n_heads=n_heads, mix=False)
    jax.block_until_ready((out, attn))

    assert out.shape == (B, L, d_model)
    assert attn.shape == (B, n_heads, L, S)
    print("KERNEL_OK")
</pallas_src>

<mosaic_0001>
module attributes {stable_mosaic.version = 11 : i64} {
  func.func @_linear_kernel(%arg0: i32, %arg1: i32, %arg2: i32, %arg3: memref<16x32xf32, #tpu.memory_space<vmem>>, %arg4: memref<32x32xf32, #tpu.memory_space<vmem>>, %arg5: memref<1x32xf32, #tpu.memory_space<vmem>>, %arg6: memref<16x32xf32, #tpu.memory_space<vmem>>, %arg7: memref<16x32xf32, #tpu.memory_space<vmem>>) attributes {dimension_semantics = [#tpu.dimension_semantics<parallel>, #tpu.dimension_semantics<parallel>, #tpu.dimension_semantics<arbitrary>], iteration_bounds = array<i64: 1, 1, 1>, scalar_prefetch = 0 : i64, scratch_operands = 1 : i64, tpu.core_type = #tpu.core_type<tc>, window_params = [{transform_indices = @transform_0, window_bounds = array<i64: 16, 32>}, {transform_indices = @transform_1, window_bounds = array<i64: 32, 32>}, {transform_indices = @transform_2, window_bounds = array<i64: 1, 32>}, {transform_indices = @transform_3, window_bounds = array<i64: 16, 32>}]} {
    %c0_i32 = arith.constant 0 : i32
    %0 = arith.cmpi eq, %arg2, %c0_i32 : i32
    %1 = arith.extui %0 : i1 to i32
    %c0_i32_0 = arith.constant 0 : i32
    %2 = arith.cmpi ne, %1, %c0_i32_0 : i32
    scf.if %2 {
      %cst_10 = arith.constant 0.000000e+00 : f32
      %12 = vector.broadcast %cst_10 : f32 to vector<16x32xf32>
      %c0_11 = arith.constant 0 : index
      %c0_12 = arith.constant 0 : index
      %13 = vector.load %arg7[%c0_11, %c0_12] : memref<16x32xf32, #tpu.memory_space<vmem>>, vector<16x32xf32>
      tpu.vector_store %arg7[%c0_11, %c0_12], %12 {strides = array<i32>} : memref<16x32xf32, #tpu.memory_space<vmem>>, vector<16x32xf32>,
    } else {
    }
    %c0 = arith.constant 0 : index
    %c0_1 = arith.constant 0 : index
    %3 = vector.load %arg7[%c0, %c0_1] : memref<16x32xf32, #tpu.memory_space<vmem>>, vector<16x32xf32>
    %c0_2 = arith.constant 0 : index
    %c0_3 = arith.constant 0 : index
    %4 = vector.load %arg3[%c0_2, %c0_3] : memref<16x32xf32, #tpu.memory_space<vmem>>, vector<16x32xf32>
    %c0_4 = arith.constant 0 : index
    %c0_5 = arith.constant 0 : index
    %5 = vector.load %arg4[%c0_4, %c0_5] : memref<32x32xf32, #tpu.memory_space<vmem>>, vector<32x32xf32>
    %cst = arith.constant dense<0.000000e+00> : vector<16x32xf32>
    %6 = tpu.matmul %4, %5, %cst {dimension_numbers = #tpu.dot_dimension_numbers<[1], [0], [0], [1], [0, 0, 1, 1], [], []>} : vector<16x32xf32>, vector<32x32xf32>, vector<16x32xf32> -> vector<16x32xf32>
    %7 = arith.addf %3, %6 : vector<16x32xf32>
    %c0_6 = arith.constant 0 : index
    %c0_7 = arith.constant 0 : index
    %8 = vector.load %arg7[%c0_6, %c0_7] : memref<16x32xf32, #tpu.memory_space<vmem>>, vector<16x32xf32>
    tpu.vector_store %arg7[%c0_6, %c0_7], %7 {strides = array<i32>} : memref<16x32xf32, #tpu.memory_space<vmem>>, vector<16x32xf32>,
    %c0_i32_8 = arith.constant 0 : i32
    %9 = arith.cmpi eq, %arg2, %c0_i32_8 : i32
    %10 = arith.extui %9 : i1 to i32
    %c0_i32_9 = arith.constant 0 : i32
    %11 = arith.cmpi ne, %10, %c0_i32_9 : i32
    scf.if %11 {
      %c0_10 = arith.constant 0 : index
      %c0_11 = arith.constant 0 : index
      %12 = vector.load %arg7[%c0_10, %c0_11] : memref<16x32xf32, #tpu.memory_space<vmem>>, vector<16x32xf32>
      %c0_12 = arith.constant 0 : index
      %c0_13 = arith.constant 0 : index
      %13 = vector.load %arg5[%c0_12, %c0_13] : memref<1x32xf32, #tpu.memory_space<vmem>>, vector<1x32xf32>
      %14 = vector.broadcast %13 : vector<1x32xf32> to vector<16x32xf32>
      %15 = arith.addf %12, %14 : vector<16x32xf32>
      %cst_14 = arith.constant 0.353553385 : f32
      %16 = vector.broadcast %cst_14 : f32 to vector<16x32xf32>
      %17 = arith.mulf %15, %16 : vector<16x32xf32>
      %c0_15 = arith.constant 0 : index
      %c0_16 = arith.constant 0 : index
      %18 = vector.load %arg6[%c0_15, %c0_16] : memref<16x32xf32, #tpu.memory_space<vmem>>, vector<16x32xf32>
      tpu.vector_store %arg6[%c0_15, %c0_16], %17 {strides = array<i32>} : memref<16x32xf32, #tpu.memory_space<vmem>>, vector<16x32xf32>,
    } else {
    }
    return
  }
  func.func @transform_0(%arg0: i32, %arg1: i32, %arg2: i32) -> (i32, i32) {
    %c0_i32 = arith.constant 0 : i32
    return %arg0, %arg2 : i32, i32
  }
  func.func @transform_1(%arg0: i32, %arg1: i32, %arg2: i32) -> (i32, i32) {
    %c0_i32 = arith.constant 0 : i32
    return %arg2, %arg1 : i32, i32
  }
  func.func @transform_2(%arg0: i32, %arg1: i32, %arg2: i32) -> (i32, i32) {
    %c0_i32 = arith.constant 0 : i32
    %c0_i32_0 = arith.constant 0 : i32
    return %c0_i32, %arg1 : i32, i32
  }
  func.func @transform_3(%arg0: i32, %arg1: i32, %arg2: i32) -> (i32, i32) {
    %c0_i32 = arith.constant 0 : i32
    return %arg0, %arg1 : i32, i32
  }
}

</mosaic_0001>

<llo_original>
// kernel: tpu_custom_call.1
$region0: #{tpu_custom_call.1}
  #allocation0 [shape = 'u32[]', space=smem, size = 0x4, offset = 0x4, fixed_abs, tag = 'smem constant byte address 0x4 - core index']
  #allocation1 [shape = 'u32[144,128]{1,0:T(1,128)}', space=vmem, size = 0x12000, scoped, tag = 'internal scratch']
  #allocation2 [shape = 'f32[16,32]{1,0:T(8,128)}', space=vmem, size = 0x2000, scoped, tag = 'scratch operand']
  %s0 = inlined_call_operand.hbm [shape: f32[16,32], index: 0, kind: input, shape index: {}]
  %s1 = inlined_call_operand.hbm [shape: f32[32,32], index: 1, kind: input, shape index: {}]
  %s2 = inlined_call_operand.vmem [shape: f32[1,32], index: 2, kind: input, shape index: {}]
  %s3 = inlined_call_operand.hbm [shape: f32[16,32], index: 3, kind: output, shape index: {}]
  %s4 = sld [smem:[#allocation0]]
  $region38: #{tpu_custom_call.1} parent=0
    _
  %s6 = ssub.s32 1, %s4
  %s7 = scalar_select 0, %s6, %s4
  $region1: #{tpu_custom_call.1} parent=0
    #allocation3 [shape = 'u8[8192]{0}', space=vmem, size = 0x2000, scoped, tag = 'input window, operand 0, single buffered']
    #allocation4 [shape = 's32[1]{0}', space=sflag, size = 0x4, scoped, tag = 'scoped memory for tpu_custom_call.1']
    #allocation5 [shape = 's32[1]{0}', space=sflag, size = 0x4, scoped, tag = 'scoped memory for tpu_custom_call.1']
    #allocation6 [shape = 'u8[16384]{0}', space=vmem, size = 0x4000, scoped, tag = 'input window, operand 1, single buffered']
    #allocation7 [shape = 's32[1]{0}', space=sflag, size = 0x4, scoped, tag = 'scoped memory for tpu_custom_call.1']
    #allocation8 [shape = 'u8[8192]{0}', space=vmem, size = 0x2000, scoped, tag = 'output window, operand 0, single buffered']
    %8 = vsyncpa [#allocation4], 0
    %9 = vsyncpa [#allocation7], 0
    %10 = vsyncpa [#allocation5], 0
    // Predicated region
    $region2: #{tpu_custom_call.1} parent=1 // pred_check
      _
    $region3: #{tpu_custom_call.1} parent=1 // pred_check_branch
      %12 = sbr.rel (0) target = $region5
    $region4: #{tpu_custom_call.1} parent=1 // pred_region
      %s14 = ssub.s32 256, 256
      %15 = vsyncadd [#allocation4], %s14
      %s16 = sshll.u32 [#allocation3], 4
      %s17 = int_to_ptr.vmem [resolvable:$true] %s16
      %22 = dma.hbm_to_vmem [thread:$0]  %s0, 256, %s17, [#allocation4], 128, 128, 8
    $region5: #{tpu_custom_call.1} parent=1 // pred_fallthru
      _
    // Predicated region
    $region6: #{tpu_custom_call.1} parent=1 // pred_check
      _
    $region7: #{tpu_custom_call.1} parent=1 // pred_check_branch
      %24 = sbr.rel (0) target = $region9
    $region8: #{tpu_custom_call.1} parent=1 // pred_region
      %s26 = ssub.s32 512, 512
      %27 = vsyncadd [#allocation7], %s26
      %s28 = sshll.u32 [#allocation6], 4
      %s29 = int_to_ptr.vmem [resolvable:$true] %s28
      %34 = dma.hbm_to_vmem [thread:$0]  %s1, 512, %s29, [#allocation7], 128, 128, 8
    $region9: #{tpu_custom_call.1} parent=1 // pred_fallthru
      _
    // Predicated region
    $region10: #{tpu_custom_call.1} parent=1 // pred_check
      _
    $region11: #{tpu_custom_call.1} parent=1 // pred_check_branch
      %36 = sbr.rel (0) target = $region13
    $region12: #{tpu_custom_call.1} parent=1 // pred_region
      _
    $region13: #{tpu_custom_call.1} parent=1 // pred_fallthru
      _
    // Predicated region
    $region14: #{tpu_custom_call.1} parent=1 // pred_check
      _
    $region15: #{tpu_custom_call.1} parent=1 // pred_check_branch
      %38 = sbr.rel (0) target = $region17
    $region16: #{tpu_custom_call.1} parent=1 // pred_region
      %39 = dma.done [#allocation4], 256
    $region17: #{tpu_custom_call.1} parent=1 // pred_fallthru
      _
    // Predicated region
    $region18: #{tpu_custom_call.1} parent=1 // pred_check
      _
    $region19: #{tpu_custom_call.1} parent=1 // pred_check_branch
      %41 = sbr.rel (0) target = $region21
    $region20: #{tpu_custom_call.1} parent=1 // pred_region
      %42 = dma.done [#allocation7], 512
    $region21: #{tpu_custom_call.1} parent=1 // pred_fallthru
      _
    %p43 = scmp.eq.s32.totalorder 0, 0
    // Predicated region
    $region22: #{tpu_custom_call.1} parent=1 // pred_check
      %p44 = pneg %p43
    $region23: #{tpu_custom_call.1} parent=1 // pred_check_branch
      %46 = sbr.rel (%p44) target = $region25
    $region24: #{tpu_custom_call.1} parent=1 // pred_region
      %vm47 = vcmask 261120
      %48 = vst.msk [vmem:[#allocation2] sm:$0xff] %vm47, 0.0
      %49 = vst.msk [vmem:[#allocation2 + $0x8] sm:$0xff] %vm47, 0.0
    $region25: #{tpu_custom_call.1} parent=1 // pred_fallthru
      _
    %v50 = vld [vmem:[#allocation2] sm:$0xff]
    %v51 = vld [vmem:[#allocation2 + $0x8] sm:$0xff]
    %v52 = vld [vmem:[#allocation3] sm:$0xff]
    %v53 = vld [vmem:[#allocation3 + $0x8] sm:$0xff]
    %v54 = vld [vmem:[#allocation6] sm:$0xff]
    %v55 = vld [vmem:[#allocation6 + $0x8] sm:$0xff]
    %v56 = vld [vmem:[#allocation6 + $0x10] sm:$0xff]
    %v57 = vld [vmem:[#allocation6 + $0x18] sm:$0xff]
    %vm58 = vcmask 261120
    %v60 = vsel %vm58, %v52, 0
    %v63 = vsel %vm58, %v53, 0
    %65 = vmatprep.subr.mxu0 0.0
    %66 = vmatpush1.msra.mxu0 %v54
    %67 = vmatprep.subr.mxu0 0.0
    %68 = vmatpush1.msra.mxu0 %v55
    %69 = vmatprep.subr.mxu0 0.0
    %70 = vmatpush1.msra.mxu0 %v56
    %71 = vmatprep.subr.mxu0 0.0
    %72 = vmatpush1.msra.mxu0 %v57
    %73 = vmatprep.subr.mxu0 0.0
    %74 = vmatpush1.msra.mxu0 0.0
    %75 = vmatprep.subr.mxu0 0.0
    %76 = vmatpush1.msra.mxu0 0.0
    %77 = vmatprep.subr.mxu0 0.0
    %78 = vmatpush1.msra.mxu0 0.0
    %79 = vmatprep.subr.mxu0 0.0
    %80 = vmatpush1.msra.mxu0 0.0
    %81 = vmatprep.subr.mxu0 0.0
    %82 = vmatpush1.msra.mxu0 0.0
    %83 = vmatprep.subr.mxu0 0.0
    %84 = vmatpush1.msra.mxu0 0.0
    %85 = vmatprep.subr.mxu0 0.0
    %86 = vmatpush1.msra.mxu0 0.0
    %87 = vmatprep.subr.mxu0 0.0
    %88 = vmatpush1.msra.mxu0 0.0
    %89 = vmatprep.subr.mxu0 0.0
    %90 = vmatpush1.msra.mxu0 0.0
    %91 = vmatprep.subr.mxu0 0.0
    %92 = vmatpush1.msra.mxu0 0.0
    %93 = vmatprep.subr.mxu0 0.0
    %94 = vmatpush1.msra.mxu0 0.0
    %95 = vmatprep.subr.mxu0 0.0
    %96 = vmatpush1.msra.mxu0 0.0
    %97 = vmatprep.subr.mxu0 0.0
    %98 = vmatpush1.msra.mxu0 0.0
    %99 = vmatprep.subr.mxu0 0.0
    %100 = vmatpush1.msra.mxu0 0.0
    %101 = vmatprep.subr.mxu0 0.0
    %102 = vmatpush1.msra.mxu0 0.0
    %103 = vmatprep.subr.mxu0 0.0
    %104 = vmatpush1.msra.mxu0 0.0
    %105 = vmatprep.subr.mxu0 0.0
    %106 = vmatpush1.msra.mxu0 0.0
    %107 = vmatprep.subr.mxu0 0.0
    %108 = vmatpush1.msra.mxu0 0.0
    %109 = vmatprep.subr.mxu0 0.0
    %110 = vmatpush1.msra.mxu0 0.0
    %111 = vmatprep.subr.mxu0 0.0
    %112 = vmatpush1.msra.mxu0 0.0
    %113 = vmatprep.subr.mxu0 0.0
    %114 = vmatpush1.msra.mxu0 0.0
    %115 = vmatprep.subr.mxu0 0.0
    %116 = vmatpush1.msra.mxu0 0.0
    %117 = vmatprep.subr.mxu0 0.0
    %118 = vmatpush1.msra.mxu0 0.0
    %119 = vmatprep.subr.mxu0 0.0
    %120 = vmatpush1.msra.mxu0 0.0
    %121 = vmatprep.subr.mxu0 0.0
    %122 = vmatpush1.msra.mxu0 0.0
    %123 = vmatprep.subr.mxu0 0.0
    %124 = vmatpush1.msra.mxu0 0.0
    %125 = vmatprep.subr.mxu0 0.0
    %126 = vmatpush1.msra.mxu0 0.0
    %127 = vmatprep.subr.mxu0 0.0
    %128 = vmatpush1.msra.mxu0 0.0
    %129 = vmatprep.mubr.f32.mxu0 0.0
    %130 = vmatmul.mubr.f32.gmra.mrb[0].mxu0 %v60
    %v131 = vpop.f32.mrb[0].mxu0
    %v132 = vadd.f32 0.0, %v131
    %v133 = vpop.f32.mrb[0].mxu0
    %134 = vmatprep.mubr.f32.mxu0 0.0
    %135 = vmatmul.mubr.f32.gmra.mrb[0].mxu0 %v63
    %v136 = vpop.f32.mrb[0].mxu0
    %v137 = vadd.f32 0.0, %v136
    %v138 = vpop.f32.mrb[0].mxu0
    %139 = vdwg.mxu0
    %v140 = vadd.f32 %v50, %v132
    %v141 = vadd.f32 %v51, %v137
    %142 = vst.msk [vmem:[#allocation2] sm:$0xff] %vm58, %v140
    %143 = vst.msk [vmem:[#allocation2 + $0x8] sm:$0xff] %vm58, %v141
    // Predicated region
    $region26: #{tpu_custom_call.1} parent=1 // pred_check
      %p144 = pneg %p43
    $region27: #{tpu_custom_call.1} parent=1 // pred_check_branch
      %146 = sbr.rel (%p144) target = $region29
    $region28: #{tpu_custom_call.1} parent=1 // pred_region
      %v147 = vld [vmem:[#allocation2] sm:$0xff]
      %v148 = vld [vmem:[#allocation2 + $0x8] sm:$0xff]
      %v149 = vld [vmem:[%s2] sm:$0x1]
      %v151 = vlaneseq
      %v152 = vshrl.u32 %v151, 7
      %v153 = vsub.s32 0, %v152
      %v154 = vrot.slane %v149, %v153
      %v156 = vadd.f32 %v147, %v154
      %v157 = vadd.f32 %v148, %v154
      %v158 = vmul.f32 %v156, 0.35355338
      %v159 = vmul.f32 %v157, 0.35355338
      %160 = vst.msk [vmem:[#allocation8] sm:$0xff] %vm58, %v158
      %161 = vst.msk [vmem:[#allocation8 + $0x8] sm:$0xff] %vm58, %v159
    $region29: #{tpu_custom_call.1} parent=1 // pred_fallthru
      _
    // Predicated region
    $region30: #{tpu_custom_call.1} parent=1 // pred_check
      _
    $region31: #{tpu_custom_call.1} parent=1 // pred_check_branch
      %163 = sbr.rel (0) target = $region33
    $region32: #{tpu_custom_call.1} parent=1 // pred_region
      %s165 = ssub.s32 256, 256
      %166 = vsyncadd [#allocation5], %s165
      %s167 = sshll.u32 [#allocation8], 4
      %s168 = int_to_ptr.vmem [resolvable:$true] %s167
      %173 = dma.vmem_to_hbm [thread:$0]  %s168, 256, %s3, [#allocation5], 128, 128, 8
    $region33: #{tpu_custom_call.1} parent=1 // pred_fallthru
      _
    // Predicated region
    $region34: #{tpu_custom_call.1} parent=1 // pred_check
      _
    $region35: #{tpu_custom_call.1} parent=1 // pred_check_branch
      %175 = sbr.rel (0) target = $region37
    $region36: #{tpu_custom_call.1} parent=1 // pred_region
      %176 = dma.done [#allocation5], 256
    $region37: #{tpu_custom_call.1} parent=1 // pred_fallthru
      _
    %177 = vsyncpa [#allocation4], 1
    %178 = vsyncpa [#allocation7], 1
    %179 = vsyncpa [#allocation5], 1

</llo_original>
